<compile_context>
chip_gen: v6e
topology: v6e:2x2x1
jax: 0.10.0
libtpu: 0.0.40
codegen_flags: <defaults>
</compile_context>

<pallas_src>
import jax
import jax.numpy as jnp
from jax.experimental import pallas as pl
from jax.experimental.pallas import tpu as pltpu


def _round_up(x, m):
    return ((x + m - 1) // m) * m


def fusion_kernel(x1_ref, x2_ref, w_ref, out_ref):
    # x1_ref, x2_ref, out_ref: (TB, D); w_ref: (1, D) -- resident across steps.
    x1 = x1_ref[...].astype(jnp.float32)
    x2 = x2_ref[...].astype(jnp.float32)
    w = w_ref[...].astype(jnp.float32)

    # softmax([w.x1+b, w.x2+b]) is shift-invariant -> weight of x1 is
    # sigmoid(w.(x1 - x2)); weight of x2 is 1 - that (bias cancels exactly).
    d = x1 - x2
    s = jnp.sum(d * w, axis=-1, keepdims=True)   # (TB, 1)  VPU mul + XLU reduce
    a = 1.0 / (1.0 + jnp.exp(-s))                # sigmoid  (EUP)
    out = jnp.tanh(x2 + a * d)                   # a*x1 + (1-a)*x2, then tanh
    out_ref[...] = out.astype(out_ref.dtype)


def _vmem_capacity_bytes():
    try:
        return int(pltpu.get_tpu_info().vmem_capacity_bytes)
    except Exception:
        return 64 * 1024 * 1024   # conservative fallback (v7x per-core size)


def fusion_layer(x1, x2, w, b=None, *, block_rows=None):
    """Pallas FusionLayer.forward.

    x1, x2: (B, ...) -- flattened per-sample like x.view(B, -1).
    w: (1, D) Linear weight.  b is accepted for API parity but has no effect
    on the output (softmax shift-invariance cancels it exactly).
    Returns (B, D) for B > 1, (D,) for B == 1 (matching PyTorch's .squeeze()).
    """
    B = x1.shape[0]
    x1f = x1.reshape(B, -1)
    x2f = x2.reshape(B, -1)
    D = x1f.shape[1]
    assert x2f.shape == (B, D)
    wf = jnp.asarray(w).reshape(1, D)

    out_dtype = x1f.dtype
    itemsize = jnp.dtype(out_dtype).itemsize
    row_align = 16 if itemsize < 4 else 8        # bf16 packs 2 rows per sublane

    vmem_cap = _vmem_capacity_bytes()
    # Tile budget: double-buffered I/O tiles (x1, x2, out) in the I/O dtype
    # plus ~5 live f32 (TB, D) intermediates inside the kernel body.
    tile_budget = (vmem_cap * 11) // 20          # ~55% of physical VMEM
    per_row_bytes = D * (6 * itemsize + 5 * 4)

    if block_rows is not None:
        TB = _round_up(max(int(block_rows), 1), row_align)
    else:
        TB = max(row_align,
                 (tile_budget // per_row_bytes) // row_align * row_align)
        # Keep >= 2 grid steps so both v7x TensorCores get work (no-op cost
        # of one extra ~0.35us step on single-core v5e/v6e).
        if B > row_align:
            TB = min(TB, _round_up(pl.cdiv(B, 2), row_align))
    TB = min(TB, _round_up(B, row_align))
    # TODO(synk): if even a (row_align, D) tile exceeds VMEM (D >~ 1e5 f32),
    # the feature axis would also need tiling (two-pass score + combine).

    grid = (pl.cdiv(B, TB),)
    out = pl.pallas_call(
        fusion_kernel,
        out_shape=jax.ShapeDtypeStruct((B, D), out_dtype),
        grid=grid,
        in_specs=[
            pl.BlockSpec((TB, D), lambda i: (i, 0)),
            pl.BlockSpec((TB, D), lambda i: (i, 0)),
            pl.BlockSpec((1, D), lambda i: (0, 0)),   # weight stays VMEM-resident
        ],
        out_specs=pl.BlockSpec((TB, D), lambda i: (i, 0)),
        compiler_params=pltpu.CompilerParams(
            dimension_semantics=("parallel",),
            vmem_limit_bytes=(vmem_cap * 4) // 5),
    )(x1f, x2f, wf)

    if B == 1:
        out = out[0]   # match PyTorch .squeeze() for batch size 1
    return out


def fusion_layer_ref(x1, x2, w, b):
    """Pure-JAX reference replicating the PyTorch forward exactly."""
    B = x1.shape[0]
    x1f = x1.reshape(B, -1)[:, None, :]               # (B, 1, D)
    x2f = x2.reshape(B, -1)[:, None, :]               # (B, 1, D)
    x = jnp.concatenate([x1f, x2f], axis=1)           # (B, 2, D)
    scores = jnp.einsum("bmd,od->bmo", x, w) + b      # (B, 2, 1)
    xc = jax.nn.softmax(scores, axis=1)               # (B, 2, 1)
    xc = jnp.transpose(xc, (0, 2, 1))                 # (B, 1, 2)
    out = jnp.squeeze(jnp.matmul(xc, x))              # (B, D)
    return jnp.tanh(out)


if __name__ == "__main__":
    key = jax.random.PRNGKey(0)
    k1, k2, k3, k4, kw, kb = jax.random.split(key, 6)

    # --- Test 1: small single-block path.  B=2, C=8, 4x4 -> D=128.
    B, C, H, W = 2, 8, 4, 4
    D = C * H * W
    x1 = jax.random.normal(k1, (B, C, H, W), dtype=jnp.float32)
    x2 = jax.random.normal(k2, (B, C, H, W), dtype=jnp.float32)
    bound = 1.0 / jnp.sqrt(jnp.float32(D))
    w = jax.random.uniform(kw, (1, D), jnp.float32, -bound, bound)
    b = jax.random.uniform(kb, (1,), jnp.float32, -bound, bound)

    out = jax.block_until_ready(fusion_layer(x1, x2, w, b))
    ref = fusion_layer_ref(x1, x2, w, b)
    assert out.shape == (B, D)
    assert jnp.allclose(out, ref, atol=2e-5, rtol=1e-5)

    # --- Test 2: multi-step grid, unaligned D (196), partial last row block
    # (B=20, TB=8 -> 3 steps) -- no wrapper-side padding anywhere.
    B2, C2, H2, W2 = 20, 4, 7, 7
    D2 = C2 * H2 * W2
    x1b = jax.random.normal(k3, (B2, C2, H2, W2), dtype=jnp.float32)
    x2b = jax.random.normal(k4, (B2, C2, H2, W2), dtype=jnp.float32)
    bound2 = 1.0 / jnp.sqrt(jnp.float32(D2))
    w2 = jax.random.uniform(kw, (1, D2), jnp.float32, -bound2, bound2)
    b2 = jax.random.uniform(kb, (1,), jnp.float32, -bound2, bound2)

    out2 = jax.block_until_ready(fusion_layer(x1b, x2b, w2, b2, block_rows=8))
    ref2 = fusion_layer_ref(x1b, x2b, w2, b2)
    assert out2.shape == (B2, D2)
    assert jnp.allclose(out2, ref2, atol=2e-5, rtol=1e-5)

    # --- Test 3: bf16 I/O (halves HBM traffic), automatic tile selection
    # (row_align=16, >=2-step grid), f32 math inside the kernel.
    x1c = x1b.astype(jnp.bfloat16)
    x2c = x2b.astype(jnp.bfloat16)
    out3 = jax.block_until_ready(fusion_layer(x1c, x2c, w2, b2))
    ref3 = fusion_layer_ref(x1c.astype(jnp.float32), x2c.astype(jnp.float32),
                            w2, b2)
    assert out3.shape == (B2, D2)
    assert out3.dtype == jnp.bfloat16
    assert jnp.allclose(out3.astype(jnp.float32), ref3, atol=2e-2)

    print("KERNEL_OK")
</pallas_src>

<mosaic_0001>
module attributes {stable_mosaic.version = 11 : i64} {
  func.func @fusion_kernel(%arg0: i32, %arg1: memref<8x128xf32, #tpu.memory_space<vmem>>, %arg2: memref<8x128xf32, #tpu.memory_space<vmem>>, %arg3: memref<1x128xf32, #tpu.memory_space<vmem>>, %arg4: memref<8x128xf32, #tpu.memory_space<vmem>>) attributes {dimension_semantics = [#tpu.dimension_semantics<parallel>], iteration_bounds = array<i64: 1>, scalar_prefetch = 0 : i64, scratch_operands = 0 : i64, tpu.core_type = #tpu.core_type<tc>, window_params = [{transform_indices = @transform_0, window_bounds = array<i64: 8, 128>}, {transform_indices = @transform_1, window_bounds = array<i64: 8, 128>}, {pipeline_mode = #tpu.pipeline_mode<synchronous>, transform_indices = @transform_2, window_bounds = array<i64: 1, 128>}, {transform_indices = @transform_3, window_bounds = array<i64: 8, 128>}]} {
    %c0 = arith.constant 0 : index
    %c0_0 = arith.constant 0 : index
    %0 = vector.load %arg1[%c0, %c0_0] : memref<8x128xf32, #tpu.memory_space<vmem>>, vector<8x128xf32>
    %c0_1 = arith.constant 0 : index
    %c0_2 = arith.constant 0 : index
    %1 = vector.load %arg2[%c0_1, %c0_2] : memref<8x128xf32, #tpu.memory_space<vmem>>, vector<8x128xf32>
    %c0_3 = arith.constant 0 : index
    %c0_4 = arith.constant 0 : index
    %2 = vector.load %arg3[%c0_3, %c0_4] : memref<1x128xf32, #tpu.memory_space<vmem>>, vector<1x128xf32>
    %3 = arith.subf %0, %1 : vector<8x128xf32>
    %4 = vector.broadcast %2 : vector<1x128xf32> to vector<8x128xf32>
    %5 = arith.mulf %3, %4 : vector<8x128xf32>
    %cst = arith.constant dense<0.000000e+00> : vector<8xf32>
    %6 = vector.multi_reduction <add>, %5, %cst [1] : vector<8x128xf32> to vector<8xf32>
    %7 = vector.shape_cast %6 : vector<8xf32> to vector<8x1xf32>
    %cst_5 = arith.constant 0.000000e+00 : f32
    %8 = vector.broadcast %cst_5 : f32 to vector<8x1xf32>
    %9 = arith.subf %8, %7 : vector<8x1xf32>
    %10 = math.exp %9 : vector<8x1xf32>
    %cst_6 = arith.constant 1.000000e+00 : f32
    %11 = vector.broadcast %cst_6 : f32 to vector<8x1xf32>
    %12 = arith.addf %11, %10 : vector<8x1xf32>
    %cst_7 = arith.constant 1.000000e+00 : f32
    %13 = vector.broadcast %cst_7 : f32 to vector<8x1xf32>
    %14 = arith.divf %13, %12 : vector<8x1xf32>
    %15 = vector.broadcast %14 : vector<8x1xf32> to vector<8x128xf32>
    %16 = arith.mulf %15, %3 : vector<8x128xf32>
    %17 = arith.addf %1, %16 : vector<8x128xf32>
    %18 = math.tanh %17 : vector<8x128xf32>
    %c0_8 = arith.constant 0 : index
    %c0_9 = arith.constant 0 : index
    %19 = vector.load %arg4[%c0_8, %c0_9] : memref<8x128xf32, #tpu.memory_space<vmem>>, vector<8x128xf32>
    tpu.vector_store %arg4[%c0_8, %c0_9], %18 {strides = array<i32>} : memref<8x128xf32, #tpu.memory_space<vmem>>, vector<8x128xf32>,
    return
  }
  func.func @transform_0(%arg0: i32) -> (i32, i32) {
    %c0_i32 = arith.constant 0 : i32
    %c0_i32_0 = arith.constant 0 : i32
    return %arg0, %c0_i32 : i32, i32
  }
  func.func @transform_1(%arg0: i32) -> (i32, i32) {
    %c0_i32 = arith.constant 0 : i32
    %c0_i32_0 = arith.constant 0 : i32
    return %arg0, %c0_i32 : i32, i32
  }
  func.func @transform_2(%arg0: i32) -> (i32, i32) {
    %c0_i32 = arith.constant 0 : i32
    %c0_i32_0 = arith.constant 0 : i32
    %c0_i32_1 = arith.constant 0 : i32
    return %c0_i32, %c0_i32_0 : i32, i32
  }
  func.func @transform_3(%arg0: i32) -> (i32, i32) {
    %c0_i32 = arith.constant 0 : i32
    %c0_i32_0 = arith.constant 0 : i32
    return %arg0, %c0_i32 : i32, i32
  }
}

</mosaic_0001>

<llo_original>
// kernel: tpu_custom_call.1
$region0: #{tpu_custom_call.1}
  #allocation0 [shape = 'u32[]', space=smem, size = 0x4, offset = 0x4, fixed_abs, tag = 'smem constant byte address 0x4 - core index']
  #allocation1 [shape = 'u32[144,128]{1,0:T(1,128)}', space=vmem, size = 0x12000, scoped, tag = 'internal scratch']
  %s0 = inlined_call_operand.hbm [shape: f32[2,128], index: 0, kind: input, shape index: {}]
  %s1 = inlined_call_operand.hbm [shape: f32[2,128], index: 1, kind: input, shape index: {}]
  %s2 = inlined_call_operand.vmem [shape: f32[1,128], index: 2, kind: input, shape index: {}]
  %s3 = inlined_call_operand.hbm [shape: f32[2,128], index: 3, kind: output, shape index: {}]
  %s4 = sld [smem:[#allocation0]]
  $region30: #{tpu_custom_call.1} parent=0
    _
  %s6 = ssub.s32 1, %s4
  %s7 = scalar_select 0, %s6, %s4
  $region1: #{tpu_custom_call.1} parent=0
    #allocation2 [shape = 'u8[4096]{0}', space=vmem, size = 0x1000, scoped, tag = 'input window, operand 0, single buffered']
    #allocation3 [shape = 's32[1]{0}', space=sflag, size = 0x4, scoped, tag = 'scoped memory for tpu_custom_call.1']
    #allocation4 [shape = 's32[1]{0}', space=sflag, size = 0x4, scoped, tag = 'scoped memory for tpu_custom_call.1']
    #allocation5 [shape = 'u8[4096]{0}', space=vmem, size = 0x1000, scoped, tag = 'input window, operand 1, single buffered']
    #allocation6 [shape = 's32[1]{0}', space=sflag, size = 0x4, scoped, tag = 'scoped memory for tpu_custom_call.1']
    #allocation7 [shape = 'u8[4096]{0}', space=vmem, size = 0x1000, scoped, tag = 'output window, operand 0, single buffered']
    %8 = vsyncpa [#allocation3], 0
    %9 = vsyncpa [#allocation6], 0
    %10 = vsyncpa [#allocation4], 0
    // Predicated region
    $region2: #{tpu_custom_call.1} parent=1 // pred_check
      _
    $region3: #{tpu_custom_call.1} parent=1 // pred_check_branch
      %12 = sbr.rel (0) target = $region5
    $region4: #{tpu_custom_call.1} parent=1 // pred_region
      %s14 = ssub.s32 128, 32
      %15 = vsyncadd [#allocation3], %s14
      %s16 = sshll.u32 [#allocation2], 4
      %s17 = int_to_ptr.vmem [resolvable:$true] %s16
      %22 = dma.hbm_to_vmem [thread:$0]  %s0, 32, %s17, [#allocation3], 32, 32, 2
    $region5: #{tpu_custom_call.1} parent=1 // pred_fallthru
      _
    // Predicated region
    $region6: #{tpu_custom_call.1} parent=1 // pred_check
      _
    $region7: #{tpu_custom_call.1} parent=1 // pred_check_branch
      %24 = sbr.rel (0) target = $region9
    $region8: #{tpu_custom_call.1} parent=1 // pred_region
      %s26 = ssub.s32 128, 32
      %27 = vsyncadd [#allocation6], %s26
      %s28 = sshll.u32 [#allocation5], 4
      %s29 = int_to_ptr.vmem [resolvable:$true] %s28
      %34 = dma.hbm_to_vmem [thread:$0]  %s1, 32, %s29, [#allocation6], 32, 32, 2
    $region9: #{tpu_custom_call.1} parent=1 // pred_fallthru
      _
    // Predicated region
    $region10: #{tpu_custom_call.1} parent=1 // pred_check
      _
    $region11: #{tpu_custom_call.1} parent=1 // pred_check_branch
      %36 = sbr.rel (0) target = $region13
    $region12: #{tpu_custom_call.1} parent=1 // pred_region
      _
    $region13: #{tpu_custom_call.1} parent=1 // pred_fallthru
      _
    // Predicated region
    $region14: #{tpu_custom_call.1} parent=1 // pred_check
      _
    $region15: #{tpu_custom_call.1} parent=1 // pred_check_branch
      %38 = sbr.rel (0) target = $region17
    $region16: #{tpu_custom_call.1} parent=1 // pred_region
      %39 = dma.done [#allocation3], 128
    $region17: #{tpu_custom_call.1} parent=1 // pred_fallthru
      _
    // Predicated region
    $region18: #{tpu_custom_call.1} parent=1 // pred_check
      _
    $region19: #{tpu_custom_call.1} parent=1 // pred_check_branch
      %41 = sbr.rel (0) target = $region21
    $region20: #{tpu_custom_call.1} parent=1 // pred_region
      %42 = dma.done [#allocation6], 128
    $region21: #{tpu_custom_call.1} parent=1 // pred_fallthru
      _
    %v43 = vld [vmem:[#allocation2] sm:$0xff]
    %v44 = vld [vmem:[#allocation5] sm:$0xff]
    %v45 = vld [vmem:[%s2] sm:$0x1]
    %v46 = vsub.f32 %v43, %v44
    %v48 = vlaneseq
    %v49 = vshrl.u32 %v48, 7
    %v50 = vsub.s32 0, %v49
    %v51 = vrot.slane %v45, %v50
    %v53 = vmul.f32 %v46, %v51
    %54 = vadd.xlane.f32.xlu0 %v53
    %v55 = vpop.xlane.xlu0 %54
    %v56 = vsub.f32 0.0, %v55
    %v57 = vmul.f32 %v56, 1.442695
    %v58 = vpow.pop %v57
    %v59 = vadd.f32 %v58, 1.0
    %v60 = vrcp.pop %v59
    %v61 = vmul.f32 1.0, %v60
    %v62 = vmul.f32 %v61, %v46
    %v63 = vadd.f32 %v44, %v62
    %v64 = vtanh.pop %v63
    %65 = vst [vmem:[#allocation7] sm:$0xff] %v64
    // Predicated region
    $region22: #{tpu_custom_call.1} parent=1 // pred_check
      _
    $region23: #{tpu_custom_call.1} parent=1 // pred_check_branch
      %67 = sbr.rel (0) target = $region25
    $region24: #{tpu_custom_call.1} parent=1 // pred_region
      %s69 = ssub.s32 128, 32
      %70 = vsyncadd [#allocation4], %s69
      %s71 = sshll.u32 [#allocation7], 4
      %s72 = int_to_ptr.vmem [resolvable:$true] %s71
      %77 = dma.vmem_to_hbm [thread:$0]  %s72, 32, %s3, [#allocation4], 32, 32, 2
    $region25: #{tpu_custom_call.1} parent=1 // pred_fallthru
      _
    // Predicated region
    $region26: #{tpu_custom_call.1} parent=1 // pred_check
      _
    $region27: #{tpu_custom_call.1} parent=1 // pred_check_branch
      %79 = sbr.rel (0) target = $region29
    $region28: #{tpu_custom_call.1} parent=1 // pred_region
      %80 = dma.done [#allocation4], 128
    $region29: #{tpu_custom_call.1} parent=1 // pred_fallthru
      _
    %81 = vsyncpa [#allocation3], 1
    %82 = vsyncpa [#allocation6], 1
    %83 = vsyncpa [#allocation4], 1

</llo_original>
